<compile_context>
chip_gen: v5e
topology: v5e:2x2
jax: 0.10.0
libtpu: 0.0.40
codegen_flags: <defaults>
</compile_context>

<pallas_src>
import functools

import jax
import jax.numpy as jnp
from jax import lax
from jax.experimental import pallas as pl
from jax.experimental.pallas import tpu as pltpu

LANE = 128
SUBLANE = 8


def _round_up(n, m):
    return ((n + m - 1) // m) * m


# --------------------------------------------------------------------------
# Fused kernel: entire DBN forward for one batch tile, everything in VMEM.
# refs = (w0, s0, w1, s1, ..., w{n-1}, s{n-1}, w_last, o_ref)
# Layer i (< n): h = act(h @ w_i + s_i)   (bias + eval-BN already folded in)
# Padded feature columns carry sigmoid(0)=0.5 / relu(0)=0 but always hit
# zero-padded weight rows in the next layer, so they contribute nothing.
# Final Linear(128,1)+Sigmoid is computed transposed so the output is a
# lane-dense (1, tb) row instead of a (tb, 128) tile with one real column.
# --------------------------------------------------------------------------
def _fused_dbn_kernel(x_ref, *refs, acts, b_last):
    n = len(acts)
    o_ref = refs[-1]
    w_last_ref = refs[2 * n]

    h = x_ref[...].astype(jnp.bfloat16)
    for li in range(n):
        w = refs[2 * li][...]                                  # (Kp, Np) bf16
        s = refs[2 * li + 1][...]                              # (1, Np)  f32
        z = jnp.dot(h, w, preferred_element_type=jnp.float32)  # MXU, f32 accumulate
        z = z + s
        if acts[li] == "sigmoid":
            a = 0.5 * jnp.tanh(0.5 * z) + 0.5                  # sigmoid via one EUP tanh
        else:  # relu
            a = jnp.maximum(z, 0.0)
        h = a.astype(jnp.bfloat16)

    # Final layer: (8, Kp) @ (tb, Kp)^T -> (8, tb); row 0 is the real output row.
    zt = lax.dot_general(w_last_ref[...], h,
                         dimension_numbers=(((1,), (1,)), ((), ())),
                         preferred_element_type=jnp.float32)
    zt = zt + b_last
    y = 0.5 * jnp.tanh(0.5 * zt) + 0.5
    o_ref[...] = y[:1, :].reshape(o_ref.shape).astype(o_ref.dtype)


# --------------------------------------------------------------------------
# Parameter init mirroring the PyTorch __init__ shapes (eval-mode BN stats).
# --------------------------------------------------------------------------
def init_dbn_params(key, n_visible, hidden_sizes):
    params = {"rbms": [], "classifier": []}
    sizes_in = [n_visible] + hidden_sizes[:-1]
    for n_vis, n_hid in zip(sizes_in, hidden_sizes):
        key, k = jax.random.split(key)
        W = 0.01 * jax.random.normal(k, (n_hid, n_vis), jnp.float32)
        h_bias = jnp.zeros((n_hid,), jnp.float32)
        params["rbms"].append((W, h_bias))

    eps = 1e-5
    cls_dims = [(hidden_sizes[-1], 256), (256, 128), (128, 1)]
    for i, (fin, fout) in enumerate(cls_dims):
        key, kw = jax.random.split(key)
        bound = 1.0 / jnp.sqrt(jnp.float32(fin))
        W = jax.random.uniform(kw, (fout, fin), jnp.float32, -bound, bound)
        b = jnp.zeros((fout,), jnp.float32)
        if i < 2:
            gamma = jnp.ones((fout,), jnp.float32)
            beta = jnp.zeros((fout,), jnp.float32)
            r_mean = jnp.zeros((fout,), jnp.float32)
            r_var = jnp.ones((fout,), jnp.float32)
            scale = gamma / jnp.sqrt(r_var + eps)
            shift = beta - r_mean * scale
        else:
            scale, shift = None, None
        params["classifier"].append((W, b, scale, shift))
    return params


# --------------------------------------------------------------------------
# Build the fused, jitted forward: pad / transpose / fold weights exactly once.
# --------------------------------------------------------------------------
def make_dbn_forward(params, *, tile_b=256):
    n_visible = params["rbms"][0][0].shape[1]

    # ---- Collect (W, scale-to-fold, shift, activation) for all but the last layer.
    gen = []
    for W, h_bias in params["rbms"]:
        gen.append((W, None, h_bias, "sigmoid"))
    (W1, b1, s1, t1), (W2, b2, s2, t2), (W3, b3, _, _) = params["classifier"]
    gen.append((W1, s1, b1 * s1 + t1, "relu"))   # Linear + eval-BN folded
    gen.append((W2, s2, b2 * s2 + t2, "relu"))

    # ---- Pad / transpose / fold once at build time (bf16 weights, f32 shifts).
    w_arrays, s_arrays, acts = [], [], []
    kp = n_visible                       # layer 0 contracts over the raw input width
    for (W, scale, shift, act) in gen:
        N, K = W.shape
        assert K <= kp, (K, kp)
        npad = _round_up(N, LANE)
        wt = jnp.asarray(W, jnp.float32).T                     # (K, N)
        if scale is not None:                                  # fold eval-BN scale
            wt = wt * jnp.asarray(scale, jnp.float32)[None, :]
        w_pad = jnp.zeros((kp, npad), jnp.float32).at[:K, :N].set(wt)
        s_pad = jnp.zeros((1, npad), jnp.float32).at[0, :N].set(
            jnp.asarray(shift, jnp.float32))
        w_arrays.append(w_pad.astype(jnp.bfloat16))
        s_arrays.append(s_pad)
        acts.append(act)
        kp = npad

    # Final Linear(128, 1): keep the weight as a row so the last matmul directly
    # produces the lane-dense (1, tb) output (rows 1..7 are zero padding).
    n_out, k_out = W3.shape
    assert n_out == 1 and k_out <= kp, (W3.shape, kp)
    w_last = jnp.zeros((SUBLANE, kp), jnp.float32).at[0, :k_out].set(
        jnp.asarray(W3, jnp.float32)[0]).astype(jnp.bfloat16)
    b_last = float(jnp.asarray(b3, jnp.float32)[0])

    acts = tuple(acts)
    flat_weights = []
    for w, s in zip(w_arrays, s_arrays):
        flat_weights.extend((w, s))
    flat_weights.append(w_last)
    flat_weights = tuple(flat_weights)

    kernel = functools.partial(_fused_dbn_kernel, acts=acts, b_last=b_last)

    # Full-array blocks + constant index maps: weights are DMA'd into VMEM once
    # and stay resident across the entire batch grid (no per-step re-fetch).
    weight_specs = [pl.BlockSpec(a.shape, lambda i: (0, 0)) for a in flat_weights]

    @jax.jit
    def forward(x):
        assert x.ndim == 2 and x.shape[1] == n_visible, x.shape
        B = x.shape[0]
        # Batch tile: >=2 grid steps whenever possible (feeds both v7x TensorCores
        # and overlaps x-load / out-store DMAs with compute), capped at tile_b.
        if B > SUBLANE:
            tb = min(tile_b, _round_up(pl.cdiv(B, 2), SUBLANE))
        else:
            tb = B
        num_tiles = pl.cdiv(B, tb)

        out = pl.pallas_call(
            kernel,
            out_shape=jax.ShapeDtypeStruct((num_tiles, 1, tb), jnp.float32),
            grid=(num_tiles,),
            in_specs=[pl.BlockSpec((tb, n_visible), lambda i: (i, 0))] + weight_specs,
            out_specs=pl.BlockSpec((1, 1, tb), lambda i: (i, 0, 0)),
            compiler_params=pltpu.CompilerParams(
                dimension_semantics=("parallel",)),
        )(x, *flat_weights)

        # (num_tiles, 1, tb) -> (B, 1); rows of a partial last tile are dropped.
        return out.reshape(num_tiles * tb)[:B].reshape(B, 1)

    return forward


# --------------------------------------------------------------------------
# Pure-JAX reference (same eval-mode semantics) for a correctness check.
# --------------------------------------------------------------------------
def dbn_forward_ref(params, x):
    x = jnp.asarray(x, jnp.float32)
    for W, h_bias in params["rbms"]:
        x = jax.nn.sigmoid(x @ W.T + h_bias)
    (W1, b1, s1, t1), (W2, b2, s2, t2), (W3, b3, _, _) = params["classifier"]
    x = jnp.maximum((x @ W1.T + b1) * s1 + t1, 0.0)
    x = jnp.maximum((x @ W2.T + b2) * s2 + t2, 0.0)
    return jax.nn.sigmoid(x @ W3.T + b3)


if __name__ == "__main__":
    key = jax.random.PRNGKey(0)
    batch = 8
    n_visible = 64
    hidden_sizes = [64, 32, 32]

    k_param, k_x = jax.random.split(key)
    params = init_dbn_params(k_param, n_visible, hidden_sizes)
    x = jax.random.uniform(k_x, (batch, n_visible), jnp.float32)

    forward = make_dbn_forward(params)
    out = jax.block_until_ready(forward(x))

    assert out.shape == (batch, 1), out.shape
    assert bool(jnp.all((out >= 0.0) & (out <= 1.0))), "sigmoid output out of range"

    ref = dbn_forward_ref(params, x)
    max_err = float(jnp.max(jnp.abs(out - ref)))
    assert max_err < 1e-2, f"fused kernel disagrees with reference (max abs err {max_err})"

    print("KERNEL_OK")
</pallas_src>

<mosaic_0001>
module attributes {stable_mosaic.version = 11 : i64} {
  func.func @_fused_dbn_kernel(%arg0: i32, %arg1: memref<8x64xf32, #tpu.memory_space<vmem>>, %arg2: memref<64x128xbf16, #tpu.memory_space<vmem>>, %arg3: memref<1x128xf32, #tpu.memory_space<vmem>>, %arg4: memref<128x128xbf16, #tpu.memory_space<vmem>>, %arg5: memref<1x128xf32, #tpu.memory_space<vmem>>, %arg6: memref<128x128xbf16, #tpu.memory_space<vmem>>, %arg7: memref<1x128xf32, #tpu.memory_space<vmem>>, %arg8: memref<128x256xbf16, #tpu.memory_space<vmem>>, %arg9: memref<1x256xf32, #tpu.memory_space<vmem>>, %arg10: memref<256x128xbf16, #tpu.memory_space<vmem>>, %arg11: memref<1x128xf32, #tpu.memory_space<vmem>>, %arg12: memref<8x128xbf16, #tpu.memory_space<vmem>>, %arg13: memref<1x1x8xf32, #tpu.memory_space<vmem>>) attributes {dimension_semantics = [#tpu.dimension_semantics<parallel>], iteration_bounds = array<i64: 1>, scalar_prefetch = 0 : i64, scratch_operands = 0 : i64, tpu.core_type = #tpu.core_type<tc>, window_params = [{transform_indices = @transform_0, window_bounds = array<i64: 8, 64>}, {pipeline_mode = #tpu.pipeline_mode<synchronous>, transform_indices = @transform_1, window_bounds = array<i64: 64, 128>}, {pipeline_mode = #tpu.pipeline_mode<synchronous>, transform_indices = @transform_2, window_bounds = array<i64: 1, 128>}, {pipeline_mode = #tpu.pipeline_mode<synchronous>, transform_indices = @transform_3, window_bounds = array<i64: 128, 128>}, {pipeline_mode = #tpu.pipeline_mode<synchronous>, transform_indices = @transform_4, window_bounds = array<i64: 1, 128>}, {pipeline_mode = #tpu.pipeline_mode<synchronous>, transform_indices = @transform_5, window_bounds = array<i64: 128, 128>}, {pipeline_mode = #tpu.pipeline_mode<synchronous>, transform_indices = @transform_6, window_bounds = array<i64: 1, 128>}, {pipeline_mode = #tpu.pipeline_mode<synchronous>, transform_indices = @transform_7, window_bounds = array<i64: 128, 256>}, {pipeline_mode = #tpu.pipeline_mode<synchronous>, transform_indices = @transform_8, window_bounds = array<i64: 1, 256>}, {pipeline_mode = #tpu.pipeline_mode<synchronous>, transform_indices = @transform_9, window_bounds = array<i64: 256, 128>}, {pipeline_mode = #tpu.pipeline_mode<synchronous>, transform_indices = @transform_10, window_bounds = array<i64: 1, 128>}, {pipeline_mode = #tpu.pipeline_mode<synchronous>, transform_indices = @transform_11, window_bounds = array<i64: 8, 128>}, {transform_indices = @transform_12, window_bounds = array<i64: 1, 1, 8>}]} {
    %c0 = arith.constant 0 : index
    %c0_0 = arith.constant 0 : index
    %0 = vector.load %arg1[%c0, %c0_0] : memref<8x64xf32, #tpu.memory_space<vmem>>, vector<8x64xf32>
    %1 = arith.truncf %0 : vector<8x64xf32> to vector<8x64xbf16>
    %c0_1 = arith.constant 0 : index
    %c0_2 = arith.constant 0 : index
    %2 = vector.load %arg2[%c0_1, %c0_2] : memref<64x128xbf16, #tpu.memory_space<vmem>>, vector<64x128xbf16>
    %c0_3 = arith.constant 0 : index
    %c0_4 = arith.constant 0 : index
    %3 = vector.load %arg3[%c0_3, %c0_4] : memref<1x128xf32, #tpu.memory_space<vmem>>, vector<1x128xf32>
    %cst = arith.constant dense<0.000000e+00> : vector<8x128xf32>
    %4 = tpu.matmul %1, %2, %cst {dimension_numbers = #tpu.dot_dimension_numbers<[1], [0], [0], [1], [0, 0, 1, 1], [], []>} : vector<8x64xbf16>, vector<64x128xbf16>, vector<8x128xf32> -> vector<8x128xf32>
    %5 = vector.broadcast %3 : vector<1x128xf32> to vector<8x128xf32>
    %6 = arith.addf %4, %5 : vector<8x128xf32>
    %cst_5 = arith.constant 5.000000e-01 : f32
    %7 = vector.broadcast %cst_5 : f32 to vector<8x128xf32>
    %8 = arith.mulf %7, %6 : vector<8x128xf32>
    %9 = math.tanh %8 : vector<8x128xf32>
    %cst_6 = arith.constant 5.000000e-01 : f32
    %10 = vector.broadcast %cst_6 : f32 to vector<8x128xf32>
    %11 = arith.mulf %10, %9 : vector<8x128xf32>
    %cst_7 = arith.constant 5.000000e-01 : f32
    %12 = vector.broadcast %cst_7 : f32 to vector<8x128xf32>
    %13 = arith.addf %11, %12 : vector<8x128xf32>
    %14 = arith.truncf %13 : vector<8x128xf32> to vector<8x128xbf16>
    %c0_8 = arith.constant 0 : index
    %c0_9 = arith.constant 0 : index
    %15 = vector.load %arg4[%c0_8, %c0_9] : memref<128x128xbf16, #tpu.memory_space<vmem>>, vector<128x128xbf16>
    %c0_10 = arith.constant 0 : index
    %c0_11 = arith.constant 0 : index
    %16 = vector.load %arg5[%c0_10, %c0_11] : memref<1x128xf32, #tpu.memory_space<vmem>>, vector<1x128xf32>
    %cst_12 = arith.constant dense<0.000000e+00> : vector<8x128xf32>
    %17 = tpu.matmul %14, %15, %cst_12 {dimension_numbers = #tpu.dot_dimension_numbers<[1], [0], [0], [1], [0, 0, 1, 1], [], []>} : vector<8x128xbf16>, vector<128x128xbf16>, vector<8x128xf32> -> vector<8x128xf32>
    %18 = vector.broadcast %16 : vector<1x128xf32> to vector<8x128xf32>
    %19 = arith.addf %17, %18 : vector<8x128xf32>
    %cst_13 = arith.constant 5.000000e-01 : f32
    %20 = vector.broadcast %cst_13 : f32 to vector<8x128xf32>
    %21 = arith.mulf %20, %19 : vector<8x128xf32>
    %22 = math.tanh %21 : vector<8x128xf32>
    %cst_14 = arith.constant 5.000000e-01 : f32
    %23 = vector.broadcast %cst_14 : f32 to vector<8x128xf32>
    %24 = arith.mulf %23, %22 : vector<8x128xf32>
    %cst_15 = arith.constant 5.000000e-01 : f32
    %25 = vector.broadcast %cst_15 : f32 to vector<8x128xf32>
    %26 = arith.addf %24, %25 : vector<8x128xf32>
    %27 = arith.truncf %26 : vector<8x128xf32> to vector<8x128xbf16>
    %c0_16 = arith.constant 0 : index
    %c0_17 = arith.constant 0 : index
    %28 = vector.load %arg6[%c0_16, %c0_17] : memref<128x128xbf16, #tpu.memory_space<vmem>>, vector<128x128xbf16>
    %c0_18 = arith.constant 0 : index
    %c0_19 = arith.constant 0 : index
    %29 = vector.load %arg7[%c0_18, %c0_19] : memref<1x128xf32, #tpu.memory_space<vmem>>, vector<1x128xf32>
    %cst_20 = arith.constant dense<0.000000e+00> : vector<8x128xf32>
    %30 = tpu.matmul %27, %28, %cst_20 {dimension_numbers = #tpu.dot_dimension_numbers<[1], [0], [0], [1], [0, 0, 1, 1], [], []>} : vector<8x128xbf16>, vector<128x128xbf16>, vector<8x128xf32> -> vector<8x128xf32>
    %31 = vector.broadcast %29 : vector<1x128xf32> to vector<8x128xf32>
    %32 = arith.addf %30, %31 : vector<8x128xf32>
    %cst_21 = arith.constant 5.000000e-01 : f32
    %33 = vector.broadcast %cst_21 : f32 to vector<8x128xf32>
    %34 = arith.mulf %33, %32 : vector<8x128xf32>
    %35 = math.tanh %34 : vector<8x128xf32>
    %cst_22 = arith.constant 5.000000e-01 : f32
    %36 = vector.broadcast %cst_22 : f32 to vector<8x128xf32>
    %37 = arith.mulf %36, %35 : vector<8x128xf32>
    %cst_23 = arith.constant 5.000000e-01 : f32
    %38 = vector.broadcast %cst_23 : f32 to vector<8x128xf32>
    %39 = arith.addf %37, %38 : vector<8x128xf32>
    %40 = arith.truncf %39 : vector<8x128xf32> to vector<8x128xbf16>
    %c0_24 = arith.constant 0 : index
    %c0_25 = arith.constant 0 : index
    %41 = vector.load %arg8[%c0_24, %c0_25] : memref<128x256xbf16, #tpu.memory_space<vmem>>, vector<128x256xbf16>
    %c0_26 = arith.constant 0 : index
    %c0_27 = arith.constant 0 : index
    %42 = vector.load %arg9[%c0_26, %c0_27] : memref<1x256xf32, #tpu.memory_space<vmem>>, vector<1x256xf32>
    %cst_28 = arith.constant dense<0.000000e+00> : vector<8x256xf32>
    %43 = tpu.matmul %40, %41, %cst_28 {dimension_numbers = #tpu.dot_dimension_numbers<[1], [0], [0], [1], [0, 0, 1, 1], [], []>} : vector<8x128xbf16>, vector<128x256xbf16>, vector<8x256xf32> -> vector<8x256xf32>
    %44 = vector.broadcast %42 : vector<1x256xf32> to vector<8x256xf32>
    %45 = arith.addf %43, %44 : vector<8x256xf32>
    %cst_29 = arith.constant 0.000000e+00 : f32
    %46 = vector.broadcast %cst_29 : f32 to vector<8x256xf32>
    %47 = arith.maximumf %45, %46 : vector<8x256xf32>
    %48 = arith.truncf %47 : vector<8x256xf32> to vector<8x256xbf16>
    %c0_30 = arith.constant 0 : index
    %c0_31 = arith.constant 0 : index
    %49 = vector.load %arg10[%c0_30, %c0_31] : memref<256x128xbf16, #tpu.memory_space<vmem>>, vector<256x128xbf16>
    %c0_32 = arith.constant 0 : index
    %c0_33 = arith.constant 0 : index
    %50 = vector.load %arg11[%c0_32, %c0_33] : memref<1x128xf32, #tpu.memory_space<vmem>>, vector<1x128xf32>
    %cst_34 = arith.constant dense<0.000000e+00> : vector<8x128xf32>
    %51 = tpu.matmul %48, %49, %cst_34 {dimension_numbers = #tpu.dot_dimension_numbers<[1], [0], [0], [1], [0, 0, 1, 1], [], []>} : vector<8x256xbf16>, vector<256x128xbf16>, vector<8x128xf32> -> vector<8x128xf32>
    %52 = vector.broadcast %50 : vector<1x128xf32> to vector<8x128xf32>
    %53 = arith.addf %51, %52 : vector<8x128xf32>
    %cst_35 = arith.constant 0.000000e+00 : f32
    %54 = vector.broadcast %cst_35 : f32 to vector<8x128xf32>
    %55 = arith.maximumf %53, %54 : vector<8x128xf32>
    %56 = arith.truncf %55 : vector<8x128xf32> to vector<8x128xbf16>
    %c0_36 = arith.constant 0 : index
    %c0_37 = arith.constant 0 : index
    %57 = vector.load %arg12[%c0_36, %c0_37] : memref<8x128xbf16, #tpu.memory_space<vmem>>, vector<8x128xbf16>
    %cst_38 = arith.constant dense<0.000000e+00> : vector<8x8xf32>
    %58 = tpu.matmul %57, %56, %cst_38 {dimension_numbers = #tpu.dot_dimension_numbers<[1], [1], [0], [0], [0, 0, 1, 0], [], []>} : vector<8x128xbf16>, vector<8x128xbf16>, vector<8x8xf32> -> vector<8x8xf32>
    %cst_39 = arith.constant 0.000000e+00 : f32
    %59 = vector.broadcast %cst_39 : f32 to vector<8x8xf32>
    %60 = arith.addf %58, %59 : vector<8x8xf32>
    %cst_40 = arith.constant 5.000000e-01 : f32
    %61 = vector.broadcast %cst_40 : f32 to vector<8x8xf32>
    %62 = arith.mulf %61, %60 : vector<8x8xf32>
    %63 = math.tanh %62 : vector<8x8xf32>
    %cst_41 = arith.constant 5.000000e-01 : f32
    %64 = vector.broadcast %cst_41 : f32 to vector<8x8xf32>
    %65 = arith.mulf %64, %63 : vector<8x8xf32>
    %cst_42 = arith.constant 5.000000e-01 : f32
    %66 = vector.broadcast %cst_42 : f32 to vector<8x8xf32>
    %67 = arith.addf %65, %66 : vector<8x8xf32>
    %68 = vector.extract_strided_slice %67 {offsets = [0, 0], sizes = [1, 8], strides = [1, 1]} : vector<8x8xf32> to vector<1x8xf32>
    %69 = vector.shape_cast %68 : vector<1x8xf32> to vector<1x1x8xf32>
    %c0_43 = arith.constant 0 : index
    %c0_44 = arith.constant 0 : index
    %c0_45 = arith.constant 0 : index
    %70 = vector.load %arg13[%c0_43, %c0_44, %c0_45] : memref<1x1x8xf32, #tpu.memory_space<vmem>>, vector<1x1x8xf32>
    tpu.vector_store %arg13[%c0_43, %c0_44, %c0_45], %69 {strides = array<i32>} : memref<1x1x8xf32, #tpu.memory_space<vmem>>, vector<1x1x8xf32>,
    return
  }
  func.func @transform_0(%arg0: i32) -> (i32, i32) {
    %c0_i32 = arith.constant 0 : i32
    %c0_i32_0 = arith.constant 0 : i32
    return %arg0, %c0_i32 : i32, i32
  }
  func.func @transform_1(%arg0: i32) -> (i32, i32) {
    %c0_i32 = arith.constant 0 : i32
    %c0_i32_0 = arith.constant 0 : i32
    %c0_i32_1 = arith.constant 0 : i32
    return %c0_i32, %c0_i32_0 : i32, i32
  }
  func.func @transform_2(%arg0: i32) -> (i32, i32) {
    %c0_i32 = arith.constant 0 : i32
    %c0_i32_0 = arith.constant 0 : i32
    %c0_i32_1 = arith.constant 0 : i32
    return %c0_i32, %c0_i32_0 : i32, i32
  }
  func.func @transform_3(%arg0: i32) -> (i32, i32) {
    %c0_i32 = arith.constant 0 : i32
    %c0_i32_0 = arith.constant 0 : i32
    %c0_i32_1 = arith.constant 0 : i32
    return %c0_i32, %c0_i32_0 : i32, i32
  }
  func.func @transform_4(%arg0: i32) -> (i32, i32) {
    %c0_i32 = arith.constant 0 : i32
    %c0_i32_0 = arith.constant 0 : i32
    %c0_i32_1 = arith.constant 0 : i32
    return %c0_i32, %c0_i32_0 : i32, i32
  }
  func.func @transform_5(%arg0: i32) -> (i32, i32) {
    %c0_i32 = arith.constant 0 : i32
    %c0_i32_0 = arith.constant 0 : i32
    %c0_i32_1 = arith.constant 0 : i32
    return %c0_i32, %c0_i32_0 : i32, i32
  }
  func.func @transform_6(%arg0: i32) -> (i32, i32) {
    %c0_i32 = arith.constant 0 : i32
    %c0_i32_0 = arith.constant 0 : i32
    %c0_i32_1 = arith.constant 0 : i32
    return %c0_i32, %c0_i32_0 : i32, i32
  }
  func.func @transform_7(%arg0: i32) -> (i32, i32) {
    %c0_i32 = arith.constant 0 : i32
    %c0_i32_0 = arith.constant 0 : i32
    %c0_i32_1 = arith.constant 0 : i32
    return %c0_i32, %c0_i32_0 : i32, i32
  }
  func.func @transform_8(%arg0: i32) -> (i32, i32) {
    %c0_i32 = arith.constant 0 : i32
    %c0_i32_0 = arith.constant 0 : i32
    %c0_i32_1 = arith.constant 0 : i32
    return %c0_i32, %c0_i32_0 : i32, i32
  }
  func.func @transform_9(%arg0: i32) -> (i32, i32) {
    %c0_i32 = arith.constant 0 : i32
    %c0_i32_0 = arith.constant 0 : i32
    %c0_i32_1 = arith.constant 0 : i32
    return %c0_i32, %c0_i32_0 : i32, i32
  }
  func.func @transform_10(%arg0: i32) -> (i32, i32) {
    %c0_i32 = arith.constant 0 : i32
    %c0_i32_0 = arith.constant 0 : i32
    %c0_i32_1 = arith.constant 0 : i32
    return %c0_i32, %c0_i32_0 : i32, i32
  }
  func.func @transform_11(%arg0: i32) -> (i32, i32) {
    %c0_i32 = arith.constant 0 : i32
    %c0_i32_0 = arith.constant 0 : i32
    %c0_i32_1 = arith.constant 0 : i32
    return %c0_i32, %c0_i32_0 : i32, i32
  }
  func.func @transform_12(%arg0: i32) -> (i32, i32, i32) {
    %c0_i32 = arith.constant 0 : i32
    %c0_i32_0 = arith.constant 0 : i32
    %c0_i32_1 = arith.constant 0 : i32
    return %arg0, %c0_i32, %c0_i32_0 : i32, i32, i32
  }
}

</mosaic_0001>

<llo_original>
// kernel: forward.1
$region0: #{forward.1}
  #allocation0 [shape = 'u32[]', space=smem, size = 0x4, offset = 0x4, fixed_abs, tag = 'smem constant byte address 0x4 - core index']
  #allocation1 [shape = 'u32[72,128]{1,0:T(1,128)}', space=vmem, size = 0x9000, scoped, tag = 'internal scratch']
  %s0 = inlined_call_operand.hbm [shape: f32[8,64], index: 0, kind: input, shape index: {}]
  %s1 = inlined_call_operand.hbm [shape: bf16[64,128], index: 1, kind: input, shape index: {}]
  %s2 = inlined_call_operand.vmem [shape: f32[1,128], index: 2, kind: input, shape index: {}, may-alias: {2,4,6,10}]
  %s3 = inlined_call_operand.hbm [shape: bf16[128,128], index: 3, kind: input, shape index: {}]
  %s4 = inlined_call_operand.vmem [shape: f32[1,128], index: 4, kind: input, shape index: {}, may-alias: {2,4,6,10}]
  %s5 = inlined_call_operand.hbm [shape: bf16[128,128], index: 5, kind: input, shape index: {}]
  %s6 = inlined_call_operand.vmem [shape: f32[1,128], index: 6, kind: input, shape index: {}, may-alias: {2,4,6,10}]
  %s7 = inlined_call_operand.hbm [shape: bf16[128,256], index: 7, kind: input, shape index: {}]
  %s8 = inlined_call_operand.vmem [shape: f32[1,256], index: 8, kind: input, shape index: {}]
  %s9 = inlined_call_operand.hbm [shape: bf16[256,128], index: 9, kind: input, shape index: {}]
  %s10 = inlined_call_operand.vmem [shape: f32[1,128], index: 10, kind: input, shape index: {}, may-alias: {2,4,6,10}]
  %s11 = inlined_call_operand.vmem [shape: bf16[8,128], index: 11, kind: input, shape index: {}]
  %s12 = inlined_call_operand.hbm [shape: f32[1,1,8], index: 12, kind: output, shape index: {}]
  %s13 = sld [smem:[#allocation0]]
  $region82: #{forward.1} parent=0
    _
  %s15 = ssub.s32 1, %s13
  %s16 = scalar_select 0, %s15, %s13
  $region1: #{forward.1} parent=0
    #allocation2 [shape = 'u8[4096]{0}', space=vmem, size = 0x1000, scoped, tag = 'input window, operand 0, single buffered']
    #allocation3 [shape = 's32[1]{0}', space=sflag, size = 0x4, scoped, tag = 'scoped memory for forward.1']
    #allocation4 [shape = 's32[1]{0}', space=sflag, size = 0x4, scoped, tag = 'scoped memory for forward.1']
    #allocation5 [shape = 'u8[16384]{0}', space=vmem, size = 0x4000, scoped, tag = 'input window, operand 1, single buffered']
    #allocation6 [shape = 's32[1]{0}', space=sflag, size = 0x4, scoped, tag = 'scoped memory for forward.1']
    #allocation7 [shape = 'u8[32768]{0}', space=vmem, size = 0x8000, scoped, tag = 'input window, operand 3, single buffered']
    #allocation8 [shape = 'u8[32768]{0}', space=vmem, size = 0x8000, scoped, tag = 'input window, operand 5, single buffered']
    #allocation9 [shape = 's32[1]{0}', space=sflag, size = 0x4, scoped, tag = 'scoped memory for forward.1']
    #allocation10 [shape = 'u8[65536]{0}', space=vmem, size = 0x10000, scoped, tag = 'input window, operand 7, single buffered']
    #allocation11 [shape = 'u8[65536]{0}', space=vmem, size = 0x10000, scoped, tag = 'input window, operand 9, single buffered']
    #allocation12 [shape = 's32[1]{0}', space=sflag, size = 0x4, scoped, tag = 'scoped memory for forward.1']
    #allocation13 [shape = 'u8[512]{0}', space=vmem, size = 0x400, scoped, tag = 'output window, operand 0, single buffered']
    %17 = vsyncpa [#allocation3], 0
    %18 = vsyncpa [#allocation6], 0
    %19 = vsyncpa [#allocation9], 0
    %20 = vsyncpa [#allocation12], 0
    %21 = vsyncpa [#allocation4], 0
    // Predicated region
    $region2: #{forward.1} parent=1 // pred_check
      _
    $region3: #{forward.1} parent=1 // pred_check_branch
      %23 = sbr.rel (0) target = $region5
    $region4: #{forward.1} parent=1 // pred_region
      %25 = vsyncadd [#allocation3], 0
      %s27 = sshll.u32 %s0, 4
      %s28 = int_to_ptr.hbm [resolvable:$true] %s27
      %s29 = sshll.u32 [#allocation2], 4
      %s30 = int_to_ptr.vmem [resolvable:$true] %s29
      %32 = dma.hbm_to_vmem [thread:$0]  %s28, 128, %s30, [#allocation3]
    $region5: #{forward.1} parent=1 // pred_fallthru
      _
    // Predicated region
    $region6: #{forward.1} parent=1 // pred_check
      _
    $region7: #{forward.1} parent=1 // pred_check_branch
      %34 = sbr.rel (0) target = $region9
    $region8: #{forward.1} parent=1 // pred_region
      %36 = vsyncadd [#allocation6], 0
      %s37 = sshll.u32 %s1, 4
      %s38 = int_to_ptr.hbm [resolvable:$true] %s37
      %s39 = sshll.u32 [#allocation5], 4
      %s40 = int_to_ptr.vmem [resolvable:$true] %s39
      %45 = dma.hbm_to_vmem [thread:$0]  %s38, 512, %s40, [#allocation6], 64, 64, 4
    $region9: #{forward.1} parent=1 // pred_fallthru
      _
    // Predicated region
    $region10: #{forward.1} parent=1 // pred_check
      _
    $region11: #{forward.1} parent=1 // pred_check_branch
      %47 = sbr.rel (0) target = $region13
    $region12: #{forward.1} parent=1 // pred_region
      _
    $region13: #{forward.1} parent=1 // pred_fallthru
      _
    // Predicated region
    $region14: #{forward.1} parent=1 // pred_check
      _
    $region15: #{forward.1} parent=1 // pred_check_branch
      %49 = sbr.rel (0) target = $region17
    $region16: #{forward.1} parent=1 // pred_region
      %51 = vsyncadd [#allocation6], 0
      %s52 = sshll.u32 %s3, 4
      %s53 = int_to_ptr.hbm [resolvable:$true] %s52
      %s54 = sshll.u32 [#allocation7], 4
      %s55 = int_to_ptr.vmem [resolvable:$true] %s54
      %60 = dma.hbm_to_vmem [thread:$0]  %s53, 1024, %s55, [#allocation6], 64, 64, 4
    $region17: #{forward.1} parent=1 // pred_fallthru
      _
    // Predicated region
    $region18: #{forward.1} parent=1 // pred_check
      _
    $region19: #{forward.1} parent=1 // pred_check_branch
      %62 = sbr.rel (0) target = $region21
    $region20: #{forward.1} parent=1 // pred_region
      _
    $region21: #{forward.1} parent=1 // pred_fallthru
      _
    // Predicated region
    $region22: #{forward.1} parent=1 // pred_check
      _
    $region23: #{forward.1} parent=1 // pred_check_branch
      %64 = sbr.rel (0) target = $region25
    $region24: #{forward.1} parent=1 // pred_region
      %66 = vsyncadd [#allocation9], 0
      %s67 = sshll.u32 %s5, 4
      %s68 = int_to_ptr.hbm [resolvable:$true] %s67
      %s69 = sshll.u32 [#allocation8], 4
      %s70 = int_to_ptr.vmem [resolvable:$true] %s69
      %75 = dma.hbm_to_vmem [thread:$0]  %s68, 1024, %s70, [#allocation9], 64, 64, 4
    $region25: #{forward.1} parent=1 // pred_fallthru
      _
    // Predicated region
    $region26: #{forward.1} parent=1 // pred_check
      _
    $region27: #{forward.1} parent=1 // pred_check_branch
      %77 = sbr.rel (0) target = $region29
    $region28: #{forward.1} parent=1 // pred_region
      _
    $region29: #{forward.1} parent=1 // pred_fallthru
      _
    // Predicated region
    $region30: #{forward.1} parent=1 // pred_check
      _
    $region31: #{forward.1} parent=1 // pred_check_branch
      %79 = sbr.rel (0) target = $region33
    $region32: #{forward.1} parent=1 // pred_region
      %81 = vsyncadd [#allocation9], 0
      %s82 = sshll.u32 %s7, 4
      %s83 = int_to_ptr.hbm [resolvable:$true] %s82
      %s84 = sshll.u32 [#allocation10], 4
      %s85 = int_to_ptr.vmem [resolvable:$true] %s84
      %90 = dma.hbm_to_vmem [thread:$0]  %s83, 2048, %s85, [#allocation9], 128, 128, 8
    $region33: #{forward.1} parent=1 // pred_fallthru
      _
    // Predicated region
    $region34: #{forward.1} parent=1 // pred_check
      _
    $region35: #{forward.1} parent=1 // pred_check_branch
      %92 = sbr.rel (0) target = $region37
    $region36: #{forward.1} parent=1 // pred_region
      _
    $region37: #{forward.1} parent=1 // pred_fallthru
      _
    // Predicated region
    $region38: #{forward.1} parent=1 // pred_check
      _
    $region39: #{forward.1} parent=1 // pred_check_branch
      %94 = sbr.rel (0) target = $region41
    $region40: #{forward.1} parent=1 // pred_region
      %96 = vsyncadd [#allocation12], 0
      %s97 = sshll.u32 %s9, 4
      %s98 = int_to_ptr.hbm [resolvable:$true] %s97
      %s99 = sshll.u32 [#allocation11], 4
      %s100 = int_to_ptr.vmem [resolvable:$true] %s99
      %105 = dma.hbm_to_vmem [thread:$0]  %s98, 2048, %s100, [#allocation12], 64, 64, 4
    $region41: #{forward.1} parent=1 // pred_fallthru
      _
    // Predicated region
    $region42: #{forward.1} parent=1 // pred_check
      _
    $region43: #{forward.1} parent=1 // pred_check_branch
      %107 = sbr.rel (0) target = $region45
    $region44: #{forward.1} parent=1 // pred_region
      _
    $region45: #{forward.1} parent=1 // pred_fallthru
      _
    // Predicated region
    $region46: #{forward.1} parent=1 // pred_check
      _
    $region47: #{forward.1} parent=1 // pred_check_branch
      %109 = sbr.rel (0) target = $region49
    $region48: #{forward.1} parent=1 // pred_region
      _
    $region49: #{forward.1} parent=1 // pred_fallthru
      _
    // Predicated region
    $region50: #{forward.1} parent=1 // pred_check
      _
    $region51: #{forward.1} parent=1 // pred_check_branch
      %111 = sbr.rel (0) target = $region53
    $region52: #{forward.1} parent=1 // pred_region
      %113 = dma.done [#allocation3], 128
    $region53: #{forward.1} parent=1 // pred_fallthru
      _
    // Predicated region
    $region54: #{forward.1} parent=1 // pred_check
      _
    $region55: #{forward.1} parent=1 // pred_check_branch
      %115 = sbr.rel (0) target = $region57
    $region56: #{forward.1} parent=1 // pred_region
      %117 = dma.done [#allocation6], 512
    $region57: #{forward.1} parent=1 // pred_fallthru
      _
    // Predicated region
    $region58: #{forward.1} parent=1 // pred_check
      _
    $region59: #{forward.1} parent=1 // pred_check_branch
      %119 = sbr.rel (0) target = $region61
    $region60: #{forward.1} parent=1 // pred_region
      %121 = dma.done [#allocation6], 1024
    $region61: #{forward.1} parent=1 // pred_fallthru
      _
    // Predicated region
    $region62: #{forward.1} parent=1 // pred_check
      _
    $region63: #{forward.1} parent=1 // pred_check_branch
      %123 = sbr.rel (0) target = $region65
    $region64: #{forward.1} parent=1 // pred_region
      %125 = dma.done [#allocation9], 1024
    $region65: #{forward.1} parent=1 // pred_fallthru
      _
    // Predicated region
    $region66: #{forward.1} parent=1 // pred_check
      _
    $region67: #{forward.1} parent=1 // pred_check_branch
      %127 = sbr.rel (0) target = $region69
    $region68: #{forward.1} parent=1 // pred_region
      %129 = dma.done [#allocation9], 2048
    $region69: #{forward.1} parent=1 // pred_fallthru
      _
    // Predicated region
    $region70: #{forward.1} parent=1 // pred_check
      _
    $region71: #{forward.1} parent=1 // pred_check_branch
      %131 = sbr.rel (0) target = $region73
    $region72: #{forward.1} parent=1 // pred_region
      %133 = dma.done [#allocation12], 2048
    $region73: #{forward.1} parent=1 // pred_fallthru
      _
    %v135 = vld [vmem:[#allocation2] sm:$0xff]
    %v136 = vpack.c.bf16 %v135, %v135
    %v137 = vld [vmem:[#allocation5] sm:$0xf]
    %v138 = vld [vmem:[#allocation5 + $0x4] sm:$0xf]
    %v139 = vld [vmem:[#allocation5 + $0x8] sm:$0xf]
    %v140 = vld [vmem:[#allocation5 + $0xc] sm:$0xf]
    %v141 = vld [vmem:[#allocation5 + $0x10] sm:$0xf]
    %v142 = vld [vmem:[#allocation5 + $0x14] sm:$0xf]
    %v143 = vld [vmem:[#allocation5 + $0x18] sm:$0xf]
    %v144 = vld [vmem:[#allocation5 + $0x1c] sm:$0xf]
    %v145 = vld [vmem:[%s2] sm:$0x1]
    %v147 = vperm.slane %v145, 0
    %v157 = vunpack.c.l.b16 %v137
    %v158 = vunpack.c.l.b16 %v138
    %v159 = vunpack.c.l.b16 %v139
    %v160 = vunpack.c.l.b16 %v140
    %v161 = vunpack.c.l.b16 %v141
    %v162 = vunpack.c.l.b16 %v142
    %v163 = vunpack.c.l.b16 %v143
    %v164 = vunpack.c.l.b16 %v144
    %v165 = vpack.c.b16 %v158, %v157
    %v166 = vpack.c.b16 %v160, %v159
    %v167 = vpack.c.b16 %v162, %v161
    %v168 = vpack.c.b16 %v164, %v163
    %vm173 = vcmask 523264
    %v175 = vsel %vm173, %v136, 0
    %177 = vmatpush.bf16.msra.mxu0 0
    %178 = vmatpush.bf16.msra.mxu0 0
    %179 = vmatpush.bf16.msra.mxu0 0
    %180 = vmatpush.bf16.msra.mxu0 0
    %181 = vmatpush.bf16.msra.mxu0 %v168
    %182 = vmatpush.bf16.msra.mxu0 %v167
    %183 = vmatpush.bf16.msra.mxu0 %v166
    %184 = vmatpush.bf16.msra.mxu0 %v165
    %185 = vmatmul.bf16.gmra.mxu0 %v175
    %v186 = vpop.f32.mrf.mxu0
    %v187 = vadd.f32 %v147, %v186
    %v188 = vpop.f32.mrf.mxu0
    %189 = vdwg.mxu0
    %v190 = vmul.f32 %v187, 0.5
    %v191 = vtanh.pop %v190
    %v192 = vmul.f32 %v191, 0.5
    %v193 = vadd.f32 %v192, 0.5
    %v194 = vpack.c.bf16 %v193, %v193
    %v195 = vld [vmem:[#allocation7] sm:$0xf]
    %v196 = vld [vmem:[#allocation7 + $0x4] sm:$0xf]
    %v197 = vld [vmem:[#allocation7 + $0x8] sm:$0xf]
    %v198 = vld [vmem:[#allocation7 + $0xc] sm:$0xf]
    %v199 = vld [vmem:[#allocation7 + $0x10] sm:$0xf]
    %v200 = vld [vmem:[#allocation7 + $0x14] sm:$0xf]
    %v201 = vld [vmem:[#allocation7 + $0x18] sm:$0xf]
    %v202 = vld [vmem:[#allocation7 + $0x1c] sm:$0xf]
    %v203 = vld [vmem:[#allocation7 + $0x20] sm:$0xf]
    %v204 = vld [vmem:[#allocation7 + $0x24] sm:$0xf]
    %v205 = vld [vmem:[#allocation7 + $0x28] sm:$0xf]
    %v206 = vld [vmem:[#allocation7 + $0x2c] sm:$0xf]
    %v207 = vld [vmem:[#allocation7 + $0x30] sm:$0xf]
    %v208 = vld [vmem:[#allocation7 + $0x34] sm:$0xf]
    %v209 = vld [vmem:[#allocation7 + $0x38] sm:$0xf]
    %v210 = vld [vmem:[#allocation7 + $0x3c] sm:$0xf]
    %v211 = vld [vmem:[%s4] sm:$0x1]
    %v213 = vperm.slane %v211, 0
    %v231 = vunpack.c.l.b16 %v195
    %v232 = vunpack.c.l.b16 %v196
    %v233 = vunpack.c.l.b16 %v197
    %v234 = vunpack.c.l.b16 %v198
    %v235 = vunpack.c.l.b16 %v199
    %v236 = vunpack.c.l.b16 %v200
    %v237 = vunpack.c.l.b16 %v201
    %v238 = vunpack.c.l.b16 %v202
    %v239 = vunpack.c.l.b16 %v203
    %v240 = vunpack.c.l.b16 %v204
    %v241 = vunpack.c.l.b16 %v205
    %v242 = vunpack.c.l.b16 %v206
    %v243 = vunpack.c.l.b16 %v207
    %v244 = vunpack.c.l.b16 %v208
    %v245 = vunpack.c.l.b16 %v209
    %v246 = vunpack.c.l.b16 %v210
    %v247 = vpack.c.b16 %v232, %v231
    %v248 = vpack.c.b16 %v234, %v233
    %v249 = vpack.c.b16 %v236, %v235
    %v250 = vpack.c.b16 %v238, %v237
    %v251 = vpack.c.b16 %v240, %v239
    %v252 = vpack.c.b16 %v242, %v241
    %v253 = vpack.c.b16 %v244, %v243
    %v254 = vpack.c.b16 %v246, %v245
    %263 = vmatpush.bf16.msra.mxu0 %v254
    %264 = vmatpush.bf16.msra.mxu0 %v253
    %265 = vmatpush.bf16.msra.mxu0 %v252
    %266 = vmatpush.bf16.msra.mxu0 %v251
    %267 = vmatpush.bf16.msra.mxu0 %v250
    %268 = vmatpush.bf16.msra.mxu0 %v249
    %269 = vmatpush.bf16.msra.mxu0 %v248
    %270 = vmatpush.bf16.msra.mxu0 %v247
    %271 = vmatmul.bf16.gmra.mxu0 %v194
    %v272 = vpop.f32.mrf.mxu0
    %v273 = vadd.f32 %v213, %v272
    %v274 = vpop.f32.mrf.mxu0
    %275 = vdwg.mxu0
    %v276 = vmul.f32 %v273, 0.5
    %v277 = vtanh.pop %v276
    %v278 = vmul.f32 %v277, 0.5
    %v279 = vadd.f32 %v278, 0.5
    %v280 = vpack.c.bf16 %v279, %v279
    %v281 = vld [vmem:[#allocation8] sm:$0xf]
    %v282 = vld [vmem:[#allocation8 + $0x4] sm:$0xf]
    %v283 = vld [vmem:[#allocation8 + $0x8] sm:$0xf]
    %v284 = vld [vmem:[#allocation8 + $0xc] sm:$0xf]
    %v285 = vld [vmem:[#allocation8 + $0x10] sm:$0xf]
    %v286 = vld [vmem:[#allocation8 + $0x14] sm:$0xf]
    %v287 = vld [vmem:[#allocation8 + $0x18] sm:$0xf]
    %v288 = vld [vmem:[#allocation8 + $0x1c] sm:$0xf]
    %v289 = vld [vmem:[#allocation8 + $0x20] sm:$0xf]
    %v290 = vld [vmem:[#allocation8 + $0x24] sm:$0xf]
    %v291 = vld [vmem:[#allocation8 + $0x28] sm:$0xf]
    %v292 = vld [vmem:[#allocation8 + $0x2c] sm:$0xf]
    %v293 = vld [vmem:[#allocation8 + $0x30] sm:$0xf]
    %v294 = vld [vmem:[#allocation8 + $0x34] sm:$0xf]
    %v295 = vld [vmem:[#allocation8 + $0x38] sm:$0xf]
    %v296 = vld [vmem:[#allocation8 + $0x3c] sm:$0xf]
    %v297 = vld [vmem:[%s6] sm:$0x1]
    %v299 = vperm.slane %v297, 0
    %v317 = vunpack.c.l.b16 %v281
    %v318 = vunpack.c.l.b16 %v282
    %v319 = vunpack.c.l.b16 %v283
    %v320 = vunpack.c.l.b16 %v284
    %v321 = vunpack.c.l.b16 %v285
    %v322 = vunpack.c.l.b16 %v286
    %v323 = vunpack.c.l.b16 %v287
    %v324 = vunpack.c.l.b16 %v288
    %v325 = vunpack.c.l.b16 %v289
    %v326 = vunpack.c.l.b16 %v290
    %v327 = vunpack.c.l.b16 %v291
    %v328 = vunpack.c.l.b16 %v292
    %v329 = vunpack.c.l.b16 %v293
    %v330 = vunpack.c.l.b16 %v294
    %v331 = vunpack.c.l.b16 %v295
    %v332 = vunpack.c.l.b16 %v296
    %v333 = vpack.c.b16 %v318, %v317
    %v334 = vpack.c.b16 %v320, %v319
    %v335 = vpack.c.b16 %v322, %v321
    %v336 = vpack.c.b16 %v324, %v323
    %v337 = vpack.c.b16 %v326, %v325
    %v338 = vpack.c.b16 %v328, %v327
    %v339 = vpack.c.b16 %v330, %v329
    %v340 = vpack.c.b16 %v332, %v331
    %349 = vmatpush.bf16.msra.mxu0 %v340
    %350 = vmatpush.bf16.msra.mxu0 %v339
    %351 = vmatpush.bf16.msra.mxu0 %v338
    %352 = vmatpush.bf16.msra.mxu0 %v337
    %353 = vmatpush.bf16.msra.mxu0 %v336
    %354 = vmatpush.bf16.msra.mxu0 %v335
    %355 = vmatpush.bf16.msra.mxu0 %v334
    %356 = vmatpush.bf16.msra.mxu0 %v333
    %357 = vmatmul.bf16.gmra.mxu0 %v280
    %v358 = vpop.f32.mrf.mxu0
    %v359 = vadd.f32 %v299, %v358
    %v360 = vpop.f32.mrf.mxu0
    %361 = vdwg.mxu0
    %v362 = vmul.f32 %v359, 0.5
    %v363 = vtanh.pop %v362
    %v364 = vmul.f32 %v363, 0.5
    %v365 = vadd.f32 %v364, 0.5
    %v366 = vpack.c.bf16 %v365, %v365
    %v367 = vld [vmem:[#allocation10] sm:$0xff]
    %v368 = vld [vmem:[#allocation10 + $0x8] sm:$0xff]
    %v369 = vld [vmem:[#allocation10 + $0x10] sm:$0xff]
    %v370 = vld [vmem:[#allocation10 + $0x18] sm:$0xff]
    %v371 = vld [vmem:[#allocation10 + $0x20] sm:$0xff]
    %v372 = vld [vmem:[#allocation10 + $0x28] sm:$0xff]
    %v373 = vld [vmem:[#allocation10 + $0x30] sm:$0xff]
    %v374 = vld [vmem:[#allocation10 + $0x38] sm:$0xff]
    %v375 = vld [vmem:[#allocation10 + $0x40] sm:$0xff]
    %v376 = vld [vmem:[#allocation10 + $0x48] sm:$0xff]
    %v377 = vld [vmem:[#allocation10 + $0x50] sm:$0xff]
    %v378 = vld [vmem:[#allocation10 + $0x58] sm:$0xff]
    %v379 = vld [vmem:[#allocation10 + $0x60] sm:$0xff]
    %v380 = vld [vmem:[#allocation10 + $0x68] sm:$0xff]
    %v381 = vld [vmem:[#allocation10 + $0x70] sm:$0xff]
    %v382 = vld [vmem:[#allocation10 + $0x78] sm:$0xff]
    %v383 = vld [vmem:[%s8] sm:$0x3]
    %v385 = vperm.slane %v383, 0
    %v386 = vperm.slane %v383, 1
    %v405 = vunpack.c.l.b16 %v367
    %v406 = vunpack.c.h.b16 %v367
    %v407 = vunpack.c.l.b16 %v368
    %v408 = vunpack.c.h.b16 %v368
    %v409 = vunpack.c.l.b16 %v369
    %v410 = vunpack.c.h.b16 %v369
    %v411 = vunpack.c.l.b16 %v370
    %v412 = vunpack.c.h.b16 %v370
    %v413 = vunpack.c.l.b16 %v371
    %v414 = vunpack.c.h.b16 %v371
    %v415 = vunpack.c.l.b16 %v372
    %v416 = vunpack.c.h.b16 %v372
    %v417 = vunpack.c.l.b16 %v373
    %v418 = vunpack.c.h.b16 %v373
    %v419 = vunpack.c.l.b16 %v374
    %v420 = vunpack.c.h.b16 %v374
    %v421 = vunpack.c.l.b16 %v375
    %v422 = vunpack.c.h.b16 %v375
    %v423 = vunpack.c.l.b16 %v376
    %v424 = vunpack.c.h.b16 %v376
    %v425 = vunpack.c.l.b16 %v377
    %v426 = vunpack.c.h.b16 %v377
    %v427 = vunpack.c.l.b16 %v378
    %v428 = vunpack.c.h.b16 %v378
    %v429 = vunpack.c.l.b16 %v379
    %v430 = vunpack.c.h.b16 %v379
    %v431 = vunpack.c.l.b16 %v380
    %v432 = vunpack.c.h.b16 %v380
    %v433 = vunpack.c.l.b16 %v381
    %v434 = vunpack.c.h.b16 %v381
    %v435 = vunpack.c.l.b16 %v382
    %v436 = vunpack.c.h.b16 %v382
    %v437 = vpack.c.b16 %v407, %v405
    %v438 = vpack.c.b16 %v408, %v406
    %v439 = vpack.c.b16 %v411, %v409
    %v440 = vpack.c.b16 %v412, %v410
    %v441 = vpack.c.b16 %v415, %v413
    %v442 = vpack.c.b16 %v416, %v414
    %v443 = vpack.c.b16 %v419, %v417
    %v444 = vpack.c.b16 %v420, %v418
    %v445 = vpack.c.b16 %v423, %v421
    %v446 = vpack.c.b16 %v424, %v422
    %v447 = vpack.c.b16 %v427, %v425
    %v448 = vpack.c.b16 %v428, %v426
    %v449 = vpack.c.b16 %v431, %v429
    %v450 = vpack.c.b16 %v432, %v430
    %v451 = vpack.c.b16 %v435, %v433
    %v452 = vpack.c.b16 %v436, %v434
    %469 = vmatpush.bf16.msra.mxu0 %v451
    %470 = vmatpush.bf16.msra.mxu0 %v449
    %471 = vmatpush.bf16.msra.mxu0 %v447
    %472 = vmatpush.bf16.msra.mxu0 %v445
    %473 = vmatpush.bf16.msra.mxu0 %v443
    %474 = vmatpush.bf16.msra.mxu0 %v441
    %475 = vmatpush.bf16.msra.mxu0 %v439
    %476 = vmatpush.bf16.msra.mxu0 %v437
    %477 = vmatmul.bf16.gmra.mxu0 %v366
    %v478 = vpop.f32.mrf.mxu0
    %v479 = vadd.f32 %v385, %v478
    %v480 = vpop.f32.mrf.mxu0
    %481 = vdwg.mxu0
    %482 = vmatpush.bf16.msra.mxu0 %v452
    %483 = vmatpush.bf16.msra.mxu0 %v450
    %484 = vmatpush.bf16.msra.mxu0 %v448
    %485 = vmatpush.bf16.msra.mxu0 %v446
    %486 = vmatpush.bf16.msra.mxu0 %v444
    %487 = vmatpush.bf16.msra.mxu0 %v442
    %488 = vmatpush.bf16.msra.mxu0 %v440
    %489 = vmatpush.bf16.msra.mxu0 %v438
    %490 = vmatmul.bf16.gmra.mxu0 %v366
    %v491 = vpop.f32.mrf.mxu0
    %v492 = vadd.f32 %v386, %v491
    %v493 = vpop.f32.mrf.mxu0
    %494 = vdwg.mxu0
    %v495 = vmax.f32 %v479, 0.0
    %v496 = vmax.f32 %v492, 0.0
    %v497 = vpack.c.bf16 %v495, %v495
    %v498 = vpack.c.bf16 %v496, %v496
    %v499 = vld [vmem:[#allocation11] sm:$0xf]
    %v500 = vld [vmem:[#allocation11 + $0x4] sm:$0xf]
    %v501 = vld [vmem:[#allocation11 + $0x8] sm:$0xf]
    %v502 = vld [vmem:[#allocation11 + $0xc] sm:$0xf]
    %v503 = vld [vmem:[#allocation11 + $0x10] sm:$0xf]
    %v504 = vld [vmem:[#allocation11 + $0x14] sm:$0xf]
    %v505 = vld [vmem:[#allocation11 + $0x18] sm:$0xf]
    %v506 = vld [vmem:[#allocation11 + $0x1c] sm:$0xf]
    %v507 = vld [vmem:[#allocation11 + $0x20] sm:$0xf]
    %v508 = vld [vmem:[#allocation11 + $0x24] sm:$0xf]
    %v509 = vld [vmem:[#allocation11 + $0x28] sm:$0xf]
    %v510 = vld [vmem:[#allocation11 + $0x2c] sm:$0xf]
    %v511 = vld [vmem:[#allocation11 + $0x30] sm:$0xf]
    %v512 = vld [vmem:[#allocation11 + $0x34] sm:$0xf]
    %v513 = vld [vmem:[#allocation11 + $0x38] sm:$0xf]
    %v514 = vld [vmem:[#allocation11 + $0x3c] sm:$0xf]
    %v515 = vld [vmem:[#allocation11 + $0x40] sm:$0xf]
    %v516 = vld [vmem:[#allocation11 + $0x44] sm:$0xf]
    %v517 = vld [vmem:[#allocation11 + $0x48] sm:$0xf]
    %v518 = vld [vmem:[#allocation11 + $0x4c] sm:$0xf]
    %v519 = vld [vmem:[#allocation11 + $0x50] sm:$0xf]
    %v520 = vld [vmem:[#allocation11 + $0x54] sm:$0xf]
    %v521 = vld [vmem:[#allocation11 + $0x58] sm:$0xf]
    %v522 = vld [vmem:[#allocation11 + $0x5c] sm:$0xf]
    %v523 = vld [vmem:[#allocation11 + $0x60] sm:$0xf]
    %v524 = vld [vmem:[#allocation11 + $0x64] sm:$0xf]
    %v525 = vld [vmem:[#allocation11 + $0x68] sm:$0xf]
    %v526 = vld [vmem:[#allocation11 + $0x6c] sm:$0xf]
    %v527 = vld [vmem:[#allocation11 + $0x70] sm:$0xf]
    %v528 = vld [vmem:[#allocation11 + $0x74] sm:$0xf]
    %v529 = vld [vmem:[#allocation11 + $0x78] sm:$0xf]
    %v530 = vld [vmem:[#allocation11 + $0x7c] sm:$0xf]
    %v531 = vld [vmem:[%s10] sm:$0x1]
    %v533 = vperm.slane %v531, 0
    %v567 = vunpack.c.l.b16 %v499
    %v568 = vunpack.c.l.b16 %v500
    %v569 = vunpack.c.l.b16 %v501
    %v570 = vunpack.c.l.b16 %v502
    %v571 = vunpack.c.l.b16 %v503
    %v572 = vunpack.c.l.b16 %v504
    %v573 = vunpack.c.l.b16 %v505
    %v574 = vunpack.c.l.b16 %v506
    %v575 = vunpack.c.l.b16 %v507
    %v576 = vunpack.c.l.b16 %v508
    %v577 = vunpack.c.l.b16 %v509
    %v578 = vunpack.c.l.b16 %v510
    %v579 = vunpack.c.l.b16 %v511
    %v580 = vunpack.c.l.b16 %v512
    %v581 = vunpack.c.l.b16 %v513
    %v582 = vunpack.c.l.b16 %v514
    %v583 = vunpack.c.l.b16 %v515
    %v584 = vunpack.c.l.b16 %v516
    %v585 = vunpack.c.l.b16 %v517
    %v586 = vunpack.c.l.b16 %v518
    %v587 = vunpack.c.l.b16 %v519
    %v588 = vunpack.c.l.b16 %v520
    %v589 = vunpack.c.l.b16 %v521
    %v590 = vunpack.c.l.b16 %v522
    %v591 = vunpack.c.l.b16 %v523
    %v592 = vunpack.c.l.b16 %v524
    %v593 = vunpack.c.l.b16 %v525
    %v594 = vunpack.c.l.b16 %v526
    %v595 = vunpack.c.l.b16 %v527
    %v596 = vunpack.c.l.b16 %v528
    %v597 = vunpack.c.l.b16 %v529
    %v598 = vunpack.c.l.b16 %v530
    %v599 = vpack.c.b16 %v568, %v567
    %v600 = vpack.c.b16 %v570, %v569
    %v601 = vpack.c.b16 %v572, %v571
    %v602 = vpack.c.b16 %v574, %v573
    %v603 = vpack.c.b16 %v576, %v575
    %v604 = vpack.c.b16 %v578, %v577
    %v605 = vpack.c.b16 %v580, %v579
    %v606 = vpack.c.b16 %v582, %v581
    %v607 = vpack.c.b16 %v584, %v583
    %v608 = vpack.c.b16 %v586, %v585
    %v609 = vpack.c.b16 %v588, %v587
    %v610 = vpack.c.b16 %v590, %v589
    %v611 = vpack.c.b16 %v592, %v591
    %v612 = vpack.c.b16 %v594, %v593
    %v613 = vpack.c.b16 %v596, %v595
    %v614 = vpack.c.b16 %v598, %v597
    %631 = vmatpush.bf16.msra.mxu0 %v606
    %632 = vmatpush.bf16.msra.mxu0 %v605
    %633 = vmatpush.bf16.msra.mxu0 %v604
    %634 = vmatpush.bf16.msra.mxu0 %v603
    %635 = vmatpush.bf16.msra.mxu0 %v602
    %636 = vmatpush.bf16.msra.mxu0 %v601
    %637 = vmatpush.bf16.msra.mxu0 %v600
    %638 = vmatpush.bf16.msra.mxu0 %v599
    %639 = vmatmul.bf16.gmra.mxu0 %v497
    %v640 = vpop.f32.mrf.mxu0
    %v641 = vadd.f32 %v533, %v640
    %v642 = vpop.f32.mrf.mxu0
    %643 = vdwg.mxu0
    %644 = vmatpush.bf16.msra.mxu0 %v614
    %645 = vmatpush.bf16.msra.mxu0 %v613
    %646 = vmatpush.bf16.msra.mxu0 %v612
    %647 = vmatpush.bf16.msra.mxu0 %v611
    %648 = vmatpush.bf16.msra.mxu0 %v610
    %649 = vmatpush.bf16.msra.mxu0 %v609
    %650 = vmatpush.bf16.msra.mxu0 %v608
    %651 = vmatpush.bf16.msra.mxu0 %v607
    %652 = vmatmul.bf16.gmra.mxu0 %v498
    %v653 = vpop.f32.mrf.mxu0
    %v654 = vadd.f32 %v641, %v653
    %v655 = vpop.f32.mrf.mxu0
    %656 = vdwg.mxu0
    %v657 = vmax.f32 %v654, 0.0
    %v658 = vpack.c.bf16 %v657, %v657
    %v659 = vld [vmem:[%s11] sm:$0xf]
    %660 = vmatpush.bf16.xpose.msra.mxu0 0
    %661 = vmatpush.bf16.xpose.msra.mxu0 0
    %662 = vmatpush.bf16.xpose.msra.mxu0 0
    %663 = vmatpush.bf16.xpose.msra.mxu0 0
    %664 = vmatpush.bf16.xpose.msra.mxu0 0
    %665 = vmatpush.bf16.xpose.msra.mxu0 0
    %666 = vmatpush.bf16.xpose.msra.mxu0 0
    %667 = vmatpush.bf16.xpose.msra.mxu0 %v658
    %668 = vmatmul.bf16.gmra.mxu0 %v659
    %v669 = vpop.f32.mrf.mxu0
    %v670 = vadd.f32 0.0, %v669
    %v671 = vpop.f32.mrf.mxu0
    %672 = vdwg.mxu0
    %v673 = vmul.f32 %v670, 0.5
    %v674 = vtanh.pop %v673
    %v675 = vmul.f32 %v674, 0.5
    %v676 = vadd.f32 %v675, 0.5
    %vm677 = vcmask 57344
    %678 = vst.msk [vmem:[#allocation13] sm:$0x1] %vm677, %v676
    // Predicated region
    $region74: #{forward.1} parent=1 // pred_check
      _
    $region75: #{forward.1} parent=1 // pred_check_branch
      %680 = sbr.rel (0) target = $region77
    $region76: #{forward.1} parent=1 // pred_region
      %682 = vsyncadd [#allocation4], 0
      %s684 = sshll.u32 [#allocation13], 4
      %s685 = int_to_ptr.vmem [resolvable:$true] %s684
      %s686 = sshll.u32 %s12, 4
      %s687 = int_to_ptr.hbm [resolvable:$true] %s686
      %689 = dma.vmem_to_hbm [thread:$0]  %s685, 16, %s687, [#allocation4]
    $region77: #{forward.1} parent=1 // pred_fallthru
      _
    // Predicated region
    $region78: #{forward.1} parent=1 // pred_check
      _
    $region79: #{forward.1} parent=1 // pred_check_branch
      %691 = sbr.rel (0) target = $region81
    $region80: #{forward.1} parent=1 // pred_region
      %693 = dma.done [#allocation4], 16
    $region81: #{forward.1} parent=1 // pred_fallthru
      _
    %694 = vsyncpa [#allocation3], 1
    %695 = vsyncpa [#allocation6], 1
    %696 = vsyncpa [#allocation9], 1
    %697 = vsyncpa [#allocation12], 1
    %698 = vsyncpa [#allocation4], 1

</llo_original>
